<compile_context>
chip_gen: v6e
topology: v6e:2x2x1
jax: 0.10.0
libtpu: 0.0.40
codegen_flags: <defaults>
</compile_context>

<pallas_src>
import functools

import jax
import jax.numpy as jnp
from jax.experimental import pallas as pl
from jax.experimental.pallas import tpu as pltpu

LANE = 128
SUBLANE = 8


def _cdiv(a, b):
    return -(-a // b)


def _round_up(x, m):
    return _cdiv(x, m) * m


def classifier_kernel(u_ref, v_ref, w1_ref, b1_ref, w2_ref, b2_ref, o_ref, *,
                      fuse_k):
    # u / v arrive as bf16 tiles (host-cast); elementwise product on the VPU.
    u = u_ref[...]                                   # (Bm, D) bf16
    v = v_ref[...]                                   # (Bm, D) bf16
    prod = u * v                                     # (Bm, D) bf16
    d = u.shape[1]

    if fuse_k:
        # Small D: one K=3D MXU dot instead of three K=D dots (less systolic
        # padding waste, single push/drain).
        x = jnp.concatenate([u, v, prod], axis=1)    # (Bm, 3D) bf16
        h = jnp.dot(x, w1_ref[...], preferred_element_type=jnp.float32)
    else:
        # Large D: three accumulating dots on static slices of the stacked W1
        # (static ref slices are free; no lane shuffles needed).
        h = jnp.dot(u, w1_ref[0 * d:1 * d, :], preferred_element_type=jnp.float32)
        h += jnp.dot(v, w1_ref[1 * d:2 * d, :], preferred_element_type=jnp.float32)
        h += jnp.dot(prod, w1_ref[2 * d:3 * d, :], preferred_element_type=jnp.float32)

    h = jnp.maximum(h + b1_ref[...], 0.0)            # (Bm, 512) f32

    # Layer 2: (Bm, 512) @ (512, 128-padded), lane-dense f32 writeback.
    o = jnp.dot(h.astype(jnp.bfloat16), w2_ref[...],
                preferred_element_type=jnp.float32)
    o_ref[...] = (o + b2_ref[...]).astype(o_ref.dtype)


def _vmem_bytes(bm, d, h, c_pad):
    """Rough per-TC VMEM footprint: single-buffered weights + double-buffered
    u/v/out streams + in-kernel f32 temporaries."""
    weights = (3 * d * h + h * c_pad) * 2 + (h + c_pad) * 4          # bf16 W, f32 b
    streams = 2 * (2 * bm * d * 2 + bm * c_pad * 4)                  # 2x buffered
    temps = bm * h * 4 + bm * 3 * d * 2 + bm * c_pad * 4             # h, x, o
    return weights + streams + temps


@functools.partial(jax.jit, static_argnames=("block_b",))
def classifier_forward(premise, hypothesis, w1, b1, w2, b2, *, block_b=512):
    """premise, hypothesis: (B, D) float32 (encoder == identity).

    w1: (4*D, H), b1: (1, H), w2: (H, C), b2: (1, C).
    """
    B, D = premise.shape
    H = w1.shape[1]          # 512
    C = w2.shape[1]          # 3

    # ---- host-side weight prep: fold the concat into W1, store bf16 ----
    w1s = jnp.concatenate(
        [w1[0 * D:1 * D] + w1[2 * D:3 * D],     # u    path
         w1[1 * D:2 * D] - w1[2 * D:3 * D],     # v    path
         w1[3 * D:4 * D]],                      # u*v  path
        axis=0).astype(jnp.bfloat16)                                  # (3D, H)
    b1f = b1.astype(jnp.float32).reshape(1, H)

    C_pad = LANE                                                      # 3 -> 128
    w2p = jnp.zeros((H, C_pad), jnp.bfloat16).at[:, :C].set(w2.astype(jnp.bfloat16))
    b2p = jnp.zeros((1, C_pad), jnp.float32).at[:, :C].set(b2.astype(jnp.float32))

    # ---- stream inputs in bf16: halves the only per-step HBM traffic ----
    u = premise.astype(jnp.bfloat16)
    v = hypothesis.astype(jnp.bfloat16)

    # ---- batch tiling: minimal padding waste + explicit VMEM budget ----
    # Conservative cross-generation budget (v7x: 64 MiB/TC; v5e/v6e: 128 MiB).
    target_vmem = 32 << 20
    nb = max(1, _cdiv(B, block_b))
    Bm = min(_round_up(_cdiv(B, nb), SUBLANE), _round_up(B, SUBLANE))
    while Bm > SUBLANE and _vmem_bytes(Bm, D, H, C_pad) > target_vmem:
        Bm = _round_up(Bm // 2, SUBLANE)
    B_pad = _round_up(B, Bm)
    if B_pad != B:
        pad = ((0, B_pad - B), (0, 0))
        u = jnp.pad(u, pad)
        v = jnp.pad(v, pad)
    nb = B_pad // Bm

    # Scoped VMEM request sized from the actual tiles (+25% and 2 MiB headroom),
    # so production-sized D doesn't hit the 16/32 MiB default scoped limits.
    vmem_limit = min(max(int(1.25 * _vmem_bytes(Bm, D, H, C_pad)) + (2 << 20),
                         16 << 20), 64 << 20)

    fuse_k = D < 256     # small contraction: one K=3D dot beats three K=D dots

    batch_spec = pl.BlockSpec((Bm, D), lambda i: (i, 0))

    def pinned(shape):
        # Constant index_map => fetched once; single-buffer to save VMEM.
        return pl.BlockSpec(shape, lambda i: (0, 0),
                            pipeline_mode=pl.Buffered(1))

    out_padded = pl.pallas_call(
        functools.partial(classifier_kernel, fuse_k=fuse_k),
        out_shape=jax.ShapeDtypeStruct((B_pad, C_pad), jnp.float32),
        grid=(nb,),
        in_specs=[
            batch_spec,             # u   (streamed, bf16)
            batch_spec,             # v   (streamed, bf16)
            pinned((3 * D, H)),     # stacked folded W1 (bf16, VMEM-resident)
            pinned((1, H)),         # b1
            pinned((H, C_pad)),     # W2 (lane-padded, bf16)
            pinned((1, C_pad)),     # b2 (lane-padded)
        ],
        out_specs=pl.BlockSpec((Bm, C_pad), lambda i: (i, 0)),
        compiler_params=pltpu.CompilerParams(
            dimension_semantics=("parallel",),
            vmem_limit_bytes=vmem_limit,
        ),
    )(u, v, w1s, b1f, w2p, b2p)

    # NOTE: zero-padded batch rows hold relu(b1)@W2 + b2 garbage in out_padded;
    # they are sliced off here and never observed.
    return out_padded[:B, :C]


def _reference(premise, hypothesis, w1, b1, w2, b2):
    u, v = premise, hypothesis
    x = jnp.concatenate([u, v, u - v, u * v], axis=1)
    h = jnp.maximum(x @ w1 + b1, 0.0)
    return h @ w2 + b2


if __name__ == "__main__":
    key = jax.random.PRNGKey(0)
    B = 8               # batch
    encoded_dim = 32    # encoder output width
    H = 512
    C = 3

    k_p, k_h, k_w1, k_b1, k_w2, k_b2 = jax.random.split(key, 6)

    # "Encoded" premise / hypothesis vectors (encoder == identity here).
    premise = jax.random.normal(k_p, (B, encoded_dim), dtype=jnp.float32)
    hypothesis = jax.random.normal(k_h, (B, encoded_dim), dtype=jnp.float32)

    # Deterministic parameter init (PyTorch-like uniform +-1/sqrt(fan_in)).
    fan1 = 4 * encoded_dim
    w1 = jax.random.uniform(k_w1, (fan1, H), minval=-1.0, maxval=1.0,
                            dtype=jnp.float32) / jnp.sqrt(fan1)
    b1 = jax.random.uniform(k_b1, (1, H), minval=-1.0, maxval=1.0,
                            dtype=jnp.float32) / jnp.sqrt(fan1)
    w2 = jax.random.uniform(k_w2, (H, C), minval=-1.0, maxval=1.0,
                            dtype=jnp.float32) / jnp.sqrt(H)
    b2 = jax.random.uniform(k_b2, (1, C), minval=-1.0, maxval=1.0,
                            dtype=jnp.float32) / jnp.sqrt(H)

    out = classifier_forward(premise, hypothesis, w1, b1, w2, b2)
    out = jax.block_until_ready(out)

    ref = _reference(premise, hypothesis, w1, b1, w2, b2)
    assert out.shape == (B, C), out.shape
    # bf16 inputs/weights with f32 accumulation: widened tolerance.
    assert jnp.allclose(out, ref, atol=5e-2, rtol=5e-2), "mismatch vs reference"

    print("KERNEL_OK")
</pallas_src>

<mosaic_0001>
module attributes {stable_mosaic.version = 11 : i64} {
  func.func @classifier_kernel(%arg0: i32, %arg1: memref<8x32xbf16, #tpu.memory_space<vmem>>, %arg2: memref<8x32xbf16, #tpu.memory_space<vmem>>, %arg3: memref<96x512xbf16, #tpu.memory_space<vmem>>, %arg4: memref<1x512xf32, #tpu.memory_space<vmem>>, %arg5: memref<512x128xbf16, #tpu.memory_space<vmem>>, %arg6: memref<1x128xf32, #tpu.memory_space<vmem>>, %arg7: memref<8x128xf32, #tpu.memory_space<vmem>>) attributes {dimension_semantics = [#tpu.dimension_semantics<parallel>], iteration_bounds = array<i64: 1>, scalar_prefetch = 0 : i64, scratch_operands = 0 : i64, tpu.core_type = #tpu.core_type<tc>, window_params = [{transform_indices = @transform_0, window_bounds = array<i64: 8, 32>}, {transform_indices = @transform_1, window_bounds = array<i64: 8, 32>}, {pipeline_mode = #tpu.pipeline_mode<synchronous>, transform_indices = @transform_2, window_bounds = array<i64: 96, 512>}, {pipeline_mode = #tpu.pipeline_mode<synchronous>, transform_indices = @transform_3, window_bounds = array<i64: 1, 512>}, {pipeline_mode = #tpu.pipeline_mode<synchronous>, transform_indices = @transform_4, window_bounds = array<i64: 512, 128>}, {pipeline_mode = #tpu.pipeline_mode<synchronous>, transform_indices = @transform_5, window_bounds = array<i64: 1, 128>}, {transform_indices = @transform_6, window_bounds = array<i64: 8, 128>}]} {
    %c0 = arith.constant 0 : index
    %c0_0 = arith.constant 0 : index
    %0 = vector.load %arg1[%c0, %c0_0] : memref<8x32xbf16, #tpu.memory_space<vmem>>, vector<8x32xbf16>
    %c0_1 = arith.constant 0 : index
    %c0_2 = arith.constant 0 : index
    %1 = vector.load %arg2[%c0_1, %c0_2] : memref<8x32xbf16, #tpu.memory_space<vmem>>, vector<8x32xbf16>
    %2 = arith.mulf %0, %1 : vector<8x32xbf16>
    %3 = tpu.concatenate %0, %1, %2 in 1 : vector<8x32xbf16>, vector<8x32xbf16>, vector<8x32xbf16> -> vector<8x96xbf16>
    %c0_3 = arith.constant 0 : index
    %c0_4 = arith.constant 0 : index
    %4 = vector.load %arg3[%c0_3, %c0_4] : memref<96x512xbf16, #tpu.memory_space<vmem>>, vector<96x512xbf16>
    %cst = arith.constant dense<0.000000e+00> : vector<8x512xf32>
    %5 = tpu.matmul %3, %4, %cst {dimension_numbers = #tpu.dot_dimension_numbers<[1], [0], [0], [1], [0, 0, 1, 1], [], []>} : vector<8x96xbf16>, vector<96x512xbf16>, vector<8x512xf32> -> vector<8x512xf32>
    %c0_5 = arith.constant 0 : index
    %c0_6 = arith.constant 0 : index
    %6 = vector.load %arg4[%c0_5, %c0_6] : memref<1x512xf32, #tpu.memory_space<vmem>>, vector<1x512xf32>
    %7 = vector.broadcast %6 : vector<1x512xf32> to vector<8x512xf32>
    %8 = arith.addf %5, %7 : vector<8x512xf32>
    %cst_7 = arith.constant 0.000000e+00 : f32
    %9 = vector.broadcast %cst_7 : f32 to vector<8x512xf32>
    %10 = arith.maximumf %8, %9 : vector<8x512xf32>
    %11 = arith.truncf %10 : vector<8x512xf32> to vector<8x512xbf16>
    %c0_8 = arith.constant 0 : index
    %c0_9 = arith.constant 0 : index
    %12 = vector.load %arg5[%c0_8, %c0_9] : memref<512x128xbf16, #tpu.memory_space<vmem>>, vector<512x128xbf16>
    %cst_10 = arith.constant dense<0.000000e+00> : vector<8x128xf32>
    %13 = tpu.matmul %11, %12, %cst_10 {dimension_numbers = #tpu.dot_dimension_numbers<[1], [0], [0], [1], [0, 0, 1, 1], [], []>} : vector<8x512xbf16>, vector<512x128xbf16>, vector<8x128xf32> -> vector<8x128xf32>
    %c0_11 = arith.constant 0 : index
    %c0_12 = arith.constant 0 : index
    %14 = vector.load %arg6[%c0_11, %c0_12] : memref<1x128xf32, #tpu.memory_space<vmem>>, vector<1x128xf32>
    %15 = vector.broadcast %14 : vector<1x128xf32> to vector<8x128xf32>
    %16 = arith.addf %13, %15 : vector<8x128xf32>
    %c0_13 = arith.constant 0 : index
    %c0_14 = arith.constant 0 : index
    %17 = vector.load %arg7[%c0_13, %c0_14] : memref<8x128xf32, #tpu.memory_space<vmem>>, vector<8x128xf32>
    tpu.vector_store %arg7[%c0_13, %c0_14], %16 {strides = array<i32>} : memref<8x128xf32, #tpu.memory_space<vmem>>, vector<8x128xf32>,
    return
  }
  func.func @transform_0(%arg0: i32) -> (i32, i32) {
    %c0_i32 = arith.constant 0 : i32
    %c0_i32_0 = arith.constant 0 : i32
    return %arg0, %c0_i32 : i32, i32
  }
  func.func @transform_1(%arg0: i32) -> (i32, i32) {
    %c0_i32 = arith.constant 0 : i32
    %c0_i32_0 = arith.constant 0 : i32
    return %arg0, %c0_i32 : i32, i32
  }
  func.func @transform_2(%arg0: i32) -> (i32, i32) {
    %c0_i32 = arith.constant 0 : i32
    %c0_i32_0 = arith.constant 0 : i32
    %c0_i32_1 = arith.constant 0 : i32
    return %c0_i32, %c0_i32_0 : i32, i32
  }
  func.func @transform_3(%arg0: i32) -> (i32, i32) {
    %c0_i32 = arith.constant 0 : i32
    %c0_i32_0 = arith.constant 0 : i32
    %c0_i32_1 = arith.constant 0 : i32
    return %c0_i32, %c0_i32_0 : i32, i32
  }
  func.func @transform_4(%arg0: i32) -> (i32, i32) {
    %c0_i32 = arith.constant 0 : i32
    %c0_i32_0 = arith.constant 0 : i32
    %c0_i32_1 = arith.constant 0 : i32
    return %c0_i32, %c0_i32_0 : i32, i32
  }
  func.func @transform_5(%arg0: i32) -> (i32, i32) {
    %c0_i32 = arith.constant 0 : i32
    %c0_i32_0 = arith.constant 0 : i32
    %c0_i32_1 = arith.constant 0 : i32
    return %c0_i32, %c0_i32_0 : i32, i32
  }
  func.func @transform_6(%arg0: i32) -> (i32, i32) {
    %c0_i32 = arith.constant 0 : i32
    %c0_i32_0 = arith.constant 0 : i32
    return %arg0, %c0_i32 : i32, i32
  }
}

</mosaic_0001>

<llo_original>
// kernel: classifier_forward.1
$region0: #{classifier_forward.1}
  #allocation0 [shape = 'u32[]', space=smem, size = 0x4, offset = 0x4, fixed_abs, tag = 'smem constant byte address 0x4 - core index']
  #allocation1 [shape = 'u32[144,128]{1,0:T(1,128)}', space=vmem, size = 0x12000, scoped, tag = 'internal scratch']
  %s0 = inlined_call_operand.vmem [shape: bf16[8,32], index: 0, kind: input, shape index: {}]
  %s1 = inlined_call_operand.vmem [shape: bf16[8,32], index: 1, kind: input, shape index: {}]
  %s2 = inlined_call_operand.vmem [shape: bf16[96,512], index: 2, kind: input, shape index: {}]
  %s3 = inlined_call_operand.vmem [shape: f32[1,512], index: 3, kind: input, shape index: {}]
  %s4 = inlined_call_operand.vmem [shape: bf16[512,128], index: 4, kind: input, shape index: {}]
  %s5 = inlined_call_operand.vmem [shape: f32[1,128], index: 5, kind: input, shape index: {}]
  %s6 = inlined_call_operand.vmem [shape: f32[8,128], index: 6, kind: output, shape index: {}]
  %s7 = sld [smem:[#allocation0]]
  $region34: #{classifier_forward.1} parent=0
    _
  %s9 = ssub.s32 1, %s7
  %s10 = scalar_select 0, %s9, %s7
  // Predicated region
  $region2: #{classifier_forward.1} parent=0 // pred_check
    _
  $region3: #{classifier_forward.1} parent=0 // pred_check_branch
    %12 = sbr.rel (0) target = $region5
  $region4: #{classifier_forward.1} parent=0 // pred_region
    _
  $region5: #{classifier_forward.1} parent=0 // pred_fallthru
    _
  // Predicated region
  $region6: #{classifier_forward.1} parent=0 // pred_check
    _
  $region7: #{classifier_forward.1} parent=0 // pred_check_branch
    %14 = sbr.rel (0) target = $region9
  $region8: #{classifier_forward.1} parent=0 // pred_region
    _
  $region9: #{classifier_forward.1} parent=0 // pred_fallthru
    _
  // Predicated region
  $region10: #{classifier_forward.1} parent=0 // pred_check
    _
  $region11: #{classifier_forward.1} parent=0 // pred_check_branch
    %16 = sbr.rel (0) target = $region13
  $region12: #{classifier_forward.1} parent=0 // pred_region
    _
  $region13: #{classifier_forward.1} parent=0 // pred_fallthru
    _
  // Predicated region
  $region14: #{classifier_forward.1} parent=0 // pred_check
    _
  $region15: #{classifier_forward.1} parent=0 // pred_check_branch
    %18 = sbr.rel (0) target = $region17
  $region16: #{classifier_forward.1} parent=0 // pred_region
    _
  $region17: #{classifier_forward.1} parent=0 // pred_fallthru
    _
  // Predicated region
  $region18: #{classifier_forward.1} parent=0 // pred_check
    _
  $region19: #{classifier_forward.1} parent=0 // pred_check_branch
    %20 = sbr.rel (0) target = $region21
  $region20: #{classifier_forward.1} parent=0 // pred_region
    _
  $region21: #{classifier_forward.1} parent=0 // pred_fallthru
    _
  // Predicated region
  $region22: #{classifier_forward.1} parent=0 // pred_check
    _
  $region23: #{classifier_forward.1} parent=0 // pred_check_branch
    %22 = sbr.rel (0) target = $region25
  $region24: #{classifier_forward.1} parent=0 // pred_region
    _
  $region25: #{classifier_forward.1} parent=0 // pred_fallthru
    _
  %v24 = vld [vmem:[%s0] sm:$0xf]
  %v25 = vld [vmem:[%s1] sm:$0xf]
  %v26 = vmul.bf16 %v24, %v25
  %v28 = vunpack.c.l.b16 %v25
  %v29 = vpack.c.b16 %v28, %v28
  %30 = vrot.lane.b32.xlu0 %v29, 32
  %v31 = vpop.permute.xlu0 %30
  %v33 = vunpack.c.l.b16 %v26
  %v34 = vpack.c.b16 %v33, %v33
  %35 = vrot.lane.b32.xlu0 %v34, 64
  %v36 = vpop.permute.xlu0 %35
  %vm37 = vcmask 261120
  %v40 = vsel %vm37, %v24, %v31
  %vm41 = vcmask 523264
  %v43 = vsel %vm41, %v40, %v36
  %v44 = vld [vmem:[%s2] sm:$0xff]
  %v45 = vld [vmem:[%s2 + $0x8] sm:$0xff]
  %v46 = vld [vmem:[%s2 + $0x10] sm:$0xff]
  %v47 = vld [vmem:[%s2 + $0x18] sm:$0xff]
  %v48 = vld [vmem:[%s2 + $0x20] sm:$0xff]
  %v49 = vld [vmem:[%s2 + $0x28] sm:$0xff]
  %v50 = vld [vmem:[%s2 + $0x30] sm:$0xff]
  %v51 = vld [vmem:[%s2 + $0x38] sm:$0xff]
  %v52 = vld [vmem:[%s2 + $0x40] sm:$0xff]
  %v53 = vld [vmem:[%s2 + $0x48] sm:$0xff]
  %v54 = vld [vmem:[%s2 + $0x50] sm:$0xff]
  %v55 = vld [vmem:[%s2 + $0x58] sm:$0xff]
  %v56 = vld [vmem:[%s2 + $0x60] sm:$0xff]
  %v57 = vld [vmem:[%s2 + $0x68] sm:$0xff]
  %v58 = vld [vmem:[%s2 + $0x70] sm:$0xff]
  %v59 = vld [vmem:[%s2 + $0x78] sm:$0xff]
  %v60 = vld [vmem:[%s2 + $0x80] sm:$0xff]
  %v61 = vld [vmem:[%s2 + $0x88] sm:$0xff]
  %v62 = vld [vmem:[%s2 + $0x90] sm:$0xff]
  %v63 = vld [vmem:[%s2 + $0x98] sm:$0xff]
  %v64 = vld [vmem:[%s2 + $0xa0] sm:$0xff]
  %v65 = vld [vmem:[%s2 + $0xa8] sm:$0xff]
  %v66 = vld [vmem:[%s2 + $0xb0] sm:$0xff]
  %v67 = vld [vmem:[%s2 + $0xb8] sm:$0xff]
  %v68 = vld [vmem:[%s3] sm:$0xf]
  %v70 = vlaneseq
  %v71 = vshrl.u32 %v70, 7
  %v72 = vsub.s32 0, %v71
  %v73 = vrot.slane %v68, %v72
  %v74 = vlaneseq
  %v75 = vshrl.u32 %v74, 7
  %v76 = vsub.s32 1, %v75
  %v77 = vrot.slane %v68, %v76
  %v78 = vlaneseq
  %v79 = vshrl.u32 %v78, 7
  %v80 = vsub.s32 2, %v79
  %v81 = vrot.slane %v68, %v80
  %v82 = vlaneseq
  %v83 = vshrl.u32 %v82, 7
  %v84 = vsub.s32 3, %v83
  %v85 = vrot.slane %v68, %v84
  %v114 = vunpack.c.l.b16 %v44
  %v115 = vunpack.c.h.b16 %v44
  %v116 = vunpack.c.l.b16 %v45
  %v117 = vunpack.c.h.b16 %v45
  %v118 = vunpack.c.l.b16 %v46
  %v119 = vunpack.c.h.b16 %v46
  %v120 = vunpack.c.l.b16 %v47
  %v121 = vunpack.c.h.b16 %v47
  %v122 = vunpack.c.l.b16 %v48
  %v123 = vunpack.c.h.b16 %v48
  %v124 = vunpack.c.l.b16 %v49
  %v125 = vunpack.c.h.b16 %v49
  %v126 = vunpack.c.l.b16 %v50
  %v127 = vunpack.c.h.b16 %v50
  %v128 = vunpack.c.l.b16 %v51
  %v129 = vunpack.c.h.b16 %v51
  %v130 = vunpack.c.l.b16 %v52
  %v131 = vunpack.c.h.b16 %v52
  %v132 = vunpack.c.l.b16 %v53
  %v133 = vunpack.c.h.b16 %v53
  %v134 = vunpack.c.l.b16 %v54
  %v135 = vunpack.c.h.b16 %v54
  %v136 = vunpack.c.l.b16 %v55
  %v137 = vunpack.c.h.b16 %v55
  %v138 = vunpack.c.l.b16 %v56
  %v139 = vunpack.c.h.b16 %v56
  %v140 = vunpack.c.l.b16 %v57
  %v141 = vunpack.c.h.b16 %v57
  %v142 = vunpack.c.l.b16 %v58
  %v143 = vunpack.c.h.b16 %v58
  %v144 = vunpack.c.l.b16 %v59
  %v145 = vunpack.c.h.b16 %v59
  %v146 = vunpack.c.l.b16 %v60
  %v147 = vunpack.c.h.b16 %v60
  %v148 = vunpack.c.l.b16 %v61
  %v149 = vunpack.c.h.b16 %v61
  %v150 = vunpack.c.l.b16 %v62
  %v151 = vunpack.c.h.b16 %v62
  %v152 = vunpack.c.l.b16 %v63
  %v153 = vunpack.c.h.b16 %v63
  %v154 = vunpack.c.l.b16 %v64
  %v155 = vunpack.c.h.b16 %v64
  %v156 = vunpack.c.l.b16 %v65
  %v157 = vunpack.c.h.b16 %v65
  %v158 = vunpack.c.l.b16 %v66
  %v159 = vunpack.c.h.b16 %v66
  %v160 = vunpack.c.l.b16 %v67
  %v161 = vunpack.c.h.b16 %v67
  %v162 = vpack.c.b16 %v118, %v114
  %v163 = vpack.c.b16 %v119, %v115
  %v164 = vpack.c.b16 %v120, %v116
  %v165 = vpack.c.b16 %v121, %v117
  %v166 = vpack.c.b16 %v126, %v122
  %v167 = vpack.c.b16 %v127, %v123
  %v168 = vpack.c.b16 %v128, %v124
  %v169 = vpack.c.b16 %v129, %v125
  %v170 = vpack.c.b16 %v134, %v130
  %v171 = vpack.c.b16 %v135, %v131
  %v172 = vpack.c.b16 %v136, %v132
  %v173 = vpack.c.b16 %v137, %v133
  %v174 = vpack.c.b16 %v142, %v138
  %v175 = vpack.c.b16 %v143, %v139
  %v176 = vpack.c.b16 %v144, %v140
  %v177 = vpack.c.b16 %v145, %v141
  %v178 = vpack.c.b16 %v150, %v146
  %v179 = vpack.c.b16 %v151, %v147
  %v180 = vpack.c.b16 %v152, %v148
  %v181 = vpack.c.b16 %v153, %v149
  %v182 = vpack.c.b16 %v158, %v154
  %v183 = vpack.c.b16 %v159, %v155
  %v184 = vpack.c.b16 %v160, %v156
  %v185 = vpack.c.b16 %v161, %v157
  %vm210 = vcmask 785408
  %v211 = vsel %vm210, %v43, 0
  %213 = vmatprep.subr.bf16.mxu0 0
  %214 = vmatpush1.bf16.msra.mxu0 0
  %215 = vmatprep.subr.bf16.mxu0 0
  %216 = vmatpush1.bf16.msra.mxu0 0
  %217 = vmatprep.subr.bf16.mxu0 %v183
  %218 = vmatpush1.bf16.msra.mxu0 %v182
  %219 = vmatprep.subr.bf16.mxu0 %v179
  %220 = vmatpush1.bf16.msra.mxu0 %v178
  %221 = vmatprep.subr.bf16.mxu0 %v175
  %222 = vmatpush1.bf16.msra.mxu0 %v174
  %223 = vmatprep.subr.bf16.mxu0 %v171
  %224 = vmatpush1.bf16.msra.mxu0 %v170
  %225 = vmatprep.subr.bf16.mxu0 %v167
  %226 = vmatpush1.bf16.msra.mxu0 %v166
  %227 = vmatprep.subr.bf16.mxu0 %v163
  %228 = vmatpush1.bf16.msra.mxu0 %v162
  %229 = vmatprep.subr.bf16.mxu0 0
  %230 = vmatpush2.bf16.msra.mxu0 0
  %231 = vmatprep.subr.bf16.mxu0 0
  %232 = vmatpush2.bf16.msra.mxu0 0
  %233 = vmatprep.subr.bf16.mxu0 0
  %234 = vmatpush2.bf16.msra.mxu0 0
  %235 = vmatprep.subr.bf16.mxu0 0
  %236 = vmatpush2.bf16.msra.mxu0 0
  %237 = vmatprep.subr.bf16.mxu0 0
  %238 = vmatpush2.bf16.msra.mxu0 0
  %239 = vmatprep.subr.bf16.mxu0 0
  %240 = vmatpush2.bf16.msra.mxu0 0
  %241 = vmatprep.subr.bf16.mxu0 0
  %242 = vmatpush2.bf16.msra.mxu0 0
  %243 = vmatprep.subr.bf16.mxu0 0
  %244 = vmatpush2.bf16.msra.mxu0 0
  %245 = vmatprep.mubr.bf16.mxu0 0
  %246 = vmatmul.mubr.bf16.gmra.mxu0 %v211
  %v247 = vpop.f32.mrf.mxu0
  %v248 = vadd.f32 %v73, %v247
  %v249 = vpop.f32.mrf.mxu0
  %v250 = vadd.f32 %v77, %v249
  %v251 = vpop.f32.mrf.mxu0
  %v252 = vpop.f32.mrf.mxu0
  %253 = vdwg.mxu0
  %254 = vmatprep.subr.bf16.mxu0 0
  %255 = vmatpush1.bf16.msra.mxu0 0
  %256 = vmatprep.subr.bf16.mxu0 0
  %257 = vmatpush1.bf16.msra.mxu0 0
  %258 = vmatprep.subr.bf16.mxu0 %v185
  %259 = vmatpush1.bf16.msra.mxu0 %v184
  %260 = vmatprep.subr.bf16.mxu0 %v181
  %261 = vmatpush1.bf16.msra.mxu0 %v180
  %262 = vmatprep.subr.bf16.mxu0 %v177
  %263 = vmatpush1.bf16.msra.mxu0 %v176
  %264 = vmatprep.subr.bf16.mxu0 %v173
  %265 = vmatpush1.bf16.msra.mxu0 %v172
  %266 = vmatprep.subr.bf16.mxu0 %v169
  %267 = vmatpush1.bf16.msra.mxu0 %v168
  %268 = vmatprep.subr.bf16.mxu0 %v165
  %269 = vmatpush1.bf16.msra.mxu0 %v164
  %270 = vmatprep.subr.bf16.mxu0 0
  %271 = vmatpush2.bf16.msra.mxu0 0
  %272 = vmatprep.subr.bf16.mxu0 0
  %273 = vmatpush2.bf16.msra.mxu0 0
  %274 = vmatprep.subr.bf16.mxu0 0
  %275 = vmatpush2.bf16.msra.mxu0 0
  %276 = vmatprep.subr.bf16.mxu0 0
  %277 = vmatpush2.bf16.msra.mxu0 0
  %278 = vmatprep.subr.bf16.mxu0 0
  %279 = vmatpush2.bf16.msra.mxu0 0
  %280 = vmatprep.subr.bf16.mxu0 0
  %281 = vmatpush2.bf16.msra.mxu0 0
  %282 = vmatprep.subr.bf16.mxu0 0
  %283 = vmatpush2.bf16.msra.mxu0 0
  %284 = vmatprep.subr.bf16.mxu0 0
  %285 = vmatpush2.bf16.msra.mxu0 0
  %286 = vmatprep.mubr.bf16.mxu0 0
  %287 = vmatmul.mubr.bf16.gmra.mxu0 %v211
  %v288 = vpop.f32.mrf.mxu0
  %v289 = vadd.f32 %v81, %v288
  %v290 = vpop.f32.mrf.mxu0
  %v291 = vadd.f32 %v85, %v290
  %v292 = vpop.f32.mrf.mxu0
  %v293 = vpop.f32.mrf.mxu0
  %294 = vdwg.mxu0
  %v295 = vmax.f32 %v248, 0.0
  %v296 = vmax.f32 %v250, 0.0
  %v297 = vmax.f32 %v289, 0.0
  %v298 = vmax.f32 %v291, 0.0
  %v299 = vpack.c.bf16 %v295, %v295
  %v300 = vpack.c.bf16 %v296, %v296
  %v301 = vpack.c.bf16 %v297, %v297
  %v302 = vpack.c.bf16 %v298, %v298
  %v303 = vld [vmem:[%s4] sm:$0xf]
  %v304 = vld [vmem:[%s4 + $0x4] sm:$0xf]
  %v305 = vld [vmem:[%s4 + $0x8] sm:$0xf]
  %v306 = vld [vmem:[%s4 + $0xc] sm:$0xf]
  %v307 = vld [vmem:[%s4 + $0x10] sm:$0xf]
  %v308 = vld [vmem:[%s4 + $0x14] sm:$0xf]
  %v309 = vld [vmem:[%s4 + $0x18] sm:$0xf]
  %v310 = vld [vmem:[%s4 + $0x1c] sm:$0xf]
  %v311 = vld [vmem:[%s4 + $0x20] sm:$0xf]
  %v312 = vld [vmem:[%s4 + $0x24] sm:$0xf]
  %v313 = vld [vmem:[%s4 + $0x28] sm:$0xf]
  %v314 = vld [vmem:[%s4 + $0x2c] sm:$0xf]
  %v315 = vld [vmem:[%s4 + $0x30] sm:$0xf]
  %v316 = vld [vmem:[%s4 + $0x34] sm:$0xf]
  %v317 = vld [vmem:[%s4 + $0x38] sm:$0xf]
  %v318 = vld [vmem:[%s4 + $0x3c] sm:$0xf]
  %v319 = vld [vmem:[%s4 + $0x40] sm:$0xf]
  %v320 = vld [vmem:[%s4 + $0x44] sm:$0xf]
  %v321 = vld [vmem:[%s4 + $0x48] sm:$0xf]
  %v322 = vld [vmem:[%s4 + $0x4c] sm:$0xf]
  %v323 = vld [vmem:[%s4 + $0x50] sm:$0xf]
  %v324 = vld [vmem:[%s4 + $0x54] sm:$0xf]
  %v325 = vld [vmem:[%s4 + $0x58] sm:$0xf]
  %v326 = vld [vmem:[%s4 + $0x5c] sm:$0xf]
  %v327 = vld [vmem:[%s4 + $0x60] sm:$0xf]
  %v328 = vld [vmem:[%s4 + $0x64] sm:$0xf]
  %v329 = vld [vmem:[%s4 + $0x68] sm:$0xf]
  %v330 = vld [vmem:[%s4 + $0x6c] sm:$0xf]
  %v331 = vld [vmem:[%s4 + $0x70] sm:$0xf]
  %v332 = vld [vmem:[%s4 + $0x74] sm:$0xf]
  %v333 = vld [vmem:[%s4 + $0x78] sm:$0xf]
  %v334 = vld [vmem:[%s4 + $0x7c] sm:$0xf]
  %v335 = vld [vmem:[%s4 + $0x80] sm:$0xf]
  %v336 = vld [vmem:[%s4 + $0x84] sm:$0xf]
  %v337 = vld [vmem:[%s4 + $0x88] sm:$0xf]
  %v338 = vld [vmem:[%s4 + $0x8c] sm:$0xf]
  %v339 = vld [vmem:[%s4 + $0x90] sm:$0xf]
  %v340 = vld [vmem:[%s4 + $0x94] sm:$0xf]
  %v341 = vld [vmem:[%s4 + $0x98] sm:$0xf]
  %v342 = vld [vmem:[%s4 + $0x9c] sm:$0xf]
  %v343 = vld [vmem:[%s4 + $0xa0] sm:$0xf]
  %v344 = vld [vmem:[%s4 + $0xa4] sm:$0xf]
  %v345 = vld [vmem:[%s4 + $0xa8] sm:$0xf]
  %v346 = vld [vmem:[%s4 + $0xac] sm:$0xf]
  %v347 = vld [vmem:[%s4 + $0xb0] sm:$0xf]
  %v348 = vld [vmem:[%s4 + $0xb4] sm:$0xf]
  %v349 = vld [vmem:[%s4 + $0xb8] sm:$0xf]
  %v350 = vld [vmem:[%s4 + $0xbc] sm:$0xf]
  %v351 = vld [vmem:[%s4 + $0xc0] sm:$0xf]
  %v352 = vld [vmem:[%s4 + $0xc4] sm:$0xf]
  %v353 = vld [vmem:[%s4 + $0xc8] sm:$0xf]
  %v354 = vld [vmem:[%s4 + $0xcc] sm:$0xf]
  %v355 = vld [vmem:[%s4 + $0xd0] sm:$0xf]
  %v356 = vld [vmem:[%s4 + $0xd4] sm:$0xf]
  %v357 = vld [vmem:[%s4 + $0xd8] sm:$0xf]
  %v358 = vld [vmem:[%s4 + $0xdc] sm:$0xf]
  %v359 = vld [vmem:[%s4 + $0xe0] sm:$0xf]
  %v360 = vld [vmem:[%s4 + $0xe4] sm:$0xf]
  %v361 = vld [vmem:[%s4 + $0xe8] sm:$0xf]
  %v362 = vld [vmem:[%s4 + $0xec] sm:$0xf]
  %v363 = vld [vmem:[%s4 + $0xf0] sm:$0xf]
  %v364 = vld [vmem:[%s4 + $0xf4] sm:$0xf]
  %v365 = vld [vmem:[%s4 + $0xf8] sm:$0xf]
  %v366 = vld [vmem:[%s4 + $0xfc] sm:$0xf]
  %v367 = vld [vmem:[%s5] sm:$0x1]
  %v369 = vlaneseq
  %v370 = vshrl.u32 %v369, 7
  %v371 = vsub.s32 0, %v370
  %v372 = vrot.slane %v367, %v371
  %v438 = vunpack.c.l.b16 %v303
  %v439 = vunpack.c.l.b16 %v304
  %v440 = vunpack.c.l.b16 %v305
  %v441 = vunpack.c.l.b16 %v306
  %v442 = vunpack.c.l.b16 %v307
  %v443 = vunpack.c.l.b16 %v308
  %v444 = vunpack.c.l.b16 %v309
  %v445 = vunpack.c.l.b16 %v310
  %v446 = vunpack.c.l.b16 %v311
  %v447 = vunpack.c.l.b16 %v312
  %v448 = vunpack.c.l.b16 %v313
  %v449 = vunpack.c.l.b16 %v314
  %v450 = vunpack.c.l.b16 %v315
  %v451 = vunpack.c.l.b16 %v316
  %v452 = vunpack.c.l.b16 %v317
  %v453 = vunpack.c.l.b16 %v318
  %v454 = vunpack.c.l.b16 %v319
  %v455 = vunpack.c.l.b16 %v320
  %v456 = vunpack.c.l.b16 %v321
  %v457 = vunpack.c.l.b16 %v322
  %v458 = vunpack.c.l.b16 %v323
  %v459 = vunpack.c.l.b16 %v324
  %v460 = vunpack.c.l.b16 %v325
  %v461 = vunpack.c.l.b16 %v326
  %v462 = vunpack.c.l.b16 %v327
  %v463 = vunpack.c.l.b16 %v328
  %v464 = vunpack.c.l.b16 %v329
  %v465 = vunpack.c.l.b16 %v330
  %v466 = vunpack.c.l.b16 %v331
  %v467 = vunpack.c.l.b16 %v332
  %v468 = vunpack.c.l.b16 %v333
  %v469 = vunpack.c.l.b16 %v334
  %v470 = vunpack.c.l.b16 %v335
  %v471 = vunpack.c.l.b16 %v336
  %v472 = vunpack.c.l.b16 %v337
  %v473 = vunpack.c.l.b16 %v338
  %v474 = vunpack.c.l.b16 %v339
  %v475 = vunpack.c.l.b16 %v340
  %v476 = vunpack.c.l.b16 %v341
  %v477 = vunpack.c.l.b16 %v342
  %v478 = vunpack.c.l.b16 %v343
  %v479 = vunpack.c.l.b16 %v344
  %v480 = vunpack.c.l.b16 %v345
  %v481 = vunpack.c.l.b16 %v346
  %v482 = vunpack.c.l.b16 %v347
  %v483 = vunpack.c.l.b16 %v348
  %v484 = vunpack.c.l.b16 %v349
  %v485 = vunpack.c.l.b16 %v350
  %v486 = vunpack.c.l.b16 %v351
  %v487 = vunpack.c.l.b16 %v352
  %v488 = vunpack.c.l.b16 %v353
  %v489 = vunpack.c.l.b16 %v354
  %v490 = vunpack.c.l.b16 %v355
  %v491 = vunpack.c.l.b16 %v356
  %v492 = vunpack.c.l.b16 %v357
  %v493 = vunpack.c.l.b16 %v358
  %v494 = vunpack.c.l.b16 %v359
  %v495 = vunpack.c.l.b16 %v360
  %v496 = vunpack.c.l.b16 %v361
  %v497 = vunpack.c.l.b16 %v362
  %v498 = vunpack.c.l.b16 %v363
  %v499 = vunpack.c.l.b16 %v364
  %v500 = vunpack.c.l.b16 %v365
  %v501 = vunpack.c.l.b16 %v366
  %v502 = vpack.c.b16 %v439, %v438
  %v503 = vpack.c.b16 %v441, %v440
  %v504 = vpack.c.b16 %v443, %v442
  %v505 = vpack.c.b16 %v445, %v444
  %v506 = vpack.c.b16 %v447, %v446
  %v507 = vpack.c.b16 %v449, %v448
  %v508 = vpack.c.b16 %v451, %v450
  %v509 = vpack.c.b16 %v453, %v452
  %v510 = vpack.c.b16 %v455, %v454
  %v511 = vpack.c.b16 %v457, %v456
  %v512 = vpack.c.b16 %v459, %v458
  %v513 = vpack.c.b16 %v461, %v460
  %v514 = vpack.c.b16 %v463, %v462
  %v515 = vpack.c.b16 %v465, %v464
  %v516 = vpack.c.b16 %v467, %v466
  %v517 = vpack.c.b16 %v469, %v468
  %v518 = vpack.c.b16 %v471, %v470
  %v519 = vpack.c.b16 %v473, %v472
  %v520 = vpack.c.b16 %v475, %v474
  %v521 = vpack.c.b16 %v477, %v476
  %v522 = vpack.c.b16 %v479, %v478
  %v523 = vpack.c.b16 %v481, %v480
  %v524 = vpack.c.b16 %v483, %v482
  %v525 = vpack.c.b16 %v485, %v484
  %v526 = vpack.c.b16 %v487, %v486
  %v527 = vpack.c.b16 %v489, %v488
  %v528 = vpack.c.b16 %v491, %v490
  %v529 = vpack.c.b16 %v493, %v492
  %v530 = vpack.c.b16 %v495, %v494
  %v531 = vpack.c.b16 %v497, %v496
  %v532 = vpack.c.b16 %v499, %v498
  %v533 = vpack.c.b16 %v501, %v500
  %566 = vmatprep.subr.bf16.mxu0 0
  %567 = vmatpush1.bf16.msra.mxu0 %v509
  %568 = vmatprep.subr.bf16.mxu0 0
  %569 = vmatpush1.bf16.msra.mxu0 %v508
  %570 = vmatprep.subr.bf16.mxu0 0
  %571 = vmatpush1.bf16.msra.mxu0 %v507
  %572 = vmatprep.subr.bf16.mxu0 0
  %573 = vmatpush1.bf16.msra.mxu0 %v506
  %574 = vmatprep.subr.bf16.mxu0 0
  %575 = vmatpush1.bf16.msra.mxu0 %v505
  %576 = vmatprep.subr.bf16.mxu0 0
  %577 = vmatpush1.bf16.msra.mxu0 %v504
  %578 = vmatprep.subr.bf16.mxu0 0
  %579 = vmatpush1.bf16.msra.mxu0 %v503
  %580 = vmatprep.subr.bf16.mxu0 0
  %581 = vmatpush1.bf16.msra.mxu0 %v502
  %582 = vmatprep.subr.bf16.mxu0 0
  %583 = vmatpush2.bf16.msra.mxu0 %v517
  %584 = vmatprep.subr.bf16.mxu0 0
  %585 = vmatpush2.bf16.msra.mxu0 %v516
  %586 = vmatprep.subr.bf16.mxu0 0
  %587 = vmatpush2.bf16.msra.mxu0 %v515
  %588 = vmatprep.subr.bf16.mxu0 0
  %589 = vmatpush2.bf16.msra.mxu0 %v514
  %590 = vmatprep.subr.bf16.mxu0 0
  %591 = vmatpush2.bf16.msra.mxu0 %v513
  %592 = vmatprep.subr.bf16.mxu0 0
  %593 = vmatpush2.bf16.msra.mxu0 %v512
  %594 = vmatprep.subr.bf16.mxu0 0
  %595 = vmatpush2.bf16.msra.mxu0 %v511
  %596 = vmatprep.subr.bf16.mxu0 0
  %597 = vmatpush2.bf16.msra.mxu0 %v510
  %598 = vmatprep.mubr.bf16.mxu0 %v300
  %599 = vmatmul.mubr.bf16.gmra.mxu0 %v299
  %v600 = vpop.f32.mrf.mxu0
  %v601 = vadd.f32 %v372, %v600
  %v602 = vpop.f32.mrf.mxu0
  %v603 = vpop.f32.mrf.mxu0
  %v604 = vpop.f32.mrf.mxu0
  %605 = vdwg.mxu0
  %606 = vmatprep.subr.bf16.mxu0 0
  %607 = vmatpush1.bf16.msra.mxu0 %v525
  %608 = vmatprep.subr.bf16.mxu0 0
  %609 = vmatpush1.bf16.msra.mxu0 %v524
  %610 = vmatprep.subr.bf16.mxu0 0
  %611 = vmatpush1.bf16.msra.mxu0 %v523
  %612 = vmatprep.subr.bf16.mxu0 0
  %613 = vmatpush1.bf16.msra.mxu0 %v522
  %614 = vmatprep.subr.bf16.mxu0 0
  %615 = vmatpush1.bf16.msra.mxu0 %v521
  %616 = vmatprep.subr.bf16.mxu0 0
  %617 = vmatpush1.bf16.msra.mxu0 %v520
  %618 = vmatprep.subr.bf16.mxu0 0
  %619 = vmatpush1.bf16.msra.mxu0 %v519
  %620 = vmatprep.subr.bf16.mxu0 0
  %621 = vmatpush1.bf16.msra.mxu0 %v518
  %622 = vmatprep.subr.bf16.mxu0 0
  %623 = vmatpush2.bf16.msra.mxu0 %v533
  %624 = vmatprep.subr.bf16.mxu0 0
  %625 = vmatpush2.bf16.msra.mxu0 %v532
  %626 = vmatprep.subr.bf16.mxu0 0
  %627 = vmatpush2.bf16.msra.mxu0 %v531
  %628 = vmatprep.subr.bf16.mxu0 0
  %629 = vmatpush2.bf16.msra.mxu0 %v530
  %630 = vmatprep.subr.bf16.mxu0 0
  %631 = vmatpush2.bf16.msra.mxu0 %v529
  %632 = vmatprep.subr.bf16.mxu0 0
  %633 = vmatpush2.bf16.msra.mxu0 %v528
  %634 = vmatprep.subr.bf16.mxu0 0
  %635 = vmatpush2.bf16.msra.mxu0 %v527
  %636 = vmatprep.subr.bf16.mxu0 0
  %637 = vmatpush2.bf16.msra.mxu0 %v526
  %638 = vmatprep.mubr.bf16.mxu0 %v302
  %639 = vmatmul.mubr.bf16.gmra.mxu0 %v301
  %v640 = vpop.f32.mrf.mxu0
  %v641 = vadd.f32 %v601, %v640
  %v642 = vpop.f32.mrf.mxu0
  %v643 = vpop.f32.mrf.mxu0
  %v644 = vpop.f32.mrf.mxu0
  %645 = vdwg.mxu0
  %646 = vst [vmem:[%s6] sm:$0xff] %v641
  // Predicated region
  $region26: #{classifier_forward.1} parent=0 // pred_check
    _
  $region27: #{classifier_forward.1} parent=0 // pred_check_branch
    %648 = sbr.rel (0) target = $region29
  $region28: #{classifier_forward.1} parent=0 // pred_region
    _
  $region29: #{classifier_forward.1} parent=0 // pred_fallthru
    _
  // Predicated region
  $region30: #{classifier_forward.1} parent=0 // pred_check
    _
  $region31: #{classifier_forward.1} parent=0 // pred_check_branch
    %650 = sbr.rel (0) target = $region33
  $region32: #{classifier_forward.1} parent=0 // pred_region
    _
  $region33: #{classifier_forward.1} parent=0 // pred_fallthru
    _

</llo_original>
